<compile_context>
chip_gen: v7x
topology: tpu7x:2x2x1
jax: 0.10.0
libtpu: 0.0.40
codegen_flags: <defaults>
</compile_context>

<pallas_src>
import functools

import jax
import jax.numpy as jnp
from jax.experimental import pallas as pl
from jax.experimental.pallas import tpu as pltpu

LANES = 128
SUBLANES = 8


def _minmax_partial_kernel(x_ref, min_ref, max_ref, *, nk, tr, rows, need_mask):
    """Pass 1: tiled per-sample min/max reduction.

    x_ref:   (tb, tr, 128) tile in the original dtype (upcast in-register).
    min_ref: (1, tb, 128) f32 accumulator, resident across the k (row) axis.
    max_ref: (1, tb, 128) f32 accumulator, resident across the k (row) axis.
    Grid: (batch_blocks, nsplit, nk) with k (last axis) the reduction axis.
    """
    k = pl.program_id(2)

    @pl.when(k == 0)
    def _():
        min_ref[...] = jnp.full_like(min_ref, jnp.inf)
        max_ref[...] = jnp.full_like(max_ref, -jnp.inf)

    xb = x_ref[...].astype(jnp.float32)                      # (tb, tr, 128)
    if need_mask:
        # Tail row-tile: rows >= R are garbage (partial block); neutralize.
        s = pl.program_id(1)
        row0 = (s * nk + k) * tr
        rid = jax.lax.broadcasted_iota(jnp.int32, (tr, LANES), 0) + row0
        valid = (rid < rows)[None, :, :]                     # (1, tr, 128)
        xmin = jnp.where(valid, xb, jnp.inf)
        xmax = jnp.where(valid, xb, -jnp.inf)
    else:
        xmin = xb
        xmax = xb
    min_ref[...] = jnp.minimum(min_ref[...], jnp.min(xmin, axis=1)[None])
    max_ref[...] = jnp.maximum(max_ref[...], jnp.max(xmax, axis=1)[None])


def _quantize_kernel(s_ref, x_ref, o_ref, *, qmax):
    """Pass 2: streaming elementwise quantize.

    s_ref: (3,) f32 in SMEM -> [min_v, scale, inv_scale]
    x_ref: (tb, tr, 128) tile, original dtype. o_ref: same block, original dtype.
    """
    min_v = s_ref[0]
    scale = s_ref[1]
    inv_scale = s_ref[2]
    x = x_ref[...].astype(jnp.float32)
    q = jnp.round(jnp.clip((x - min_v) * inv_scale, 0.0, qmax))
    o_ref[...] = (q * scale + min_v).astype(o_ref.dtype)


def quant_measure_forward(x, running_min, running_max,
                          num_bits=8, momentum=0.1,
                          target_block_bytes=6 * 1024 * 1024,
                          vmem_limit_bytes=48 * 1024 * 1024):
    """Training-mode QuantMeasure forward.

    Args:
      x:           (B, C, H, W) float input (any float dtype; math in f32).
      running_min: (1,) float32 buffer.
      running_max: (1,) float32 buffer.
    Returns:
      (quantized output in x.dtype, new_running_min, new_running_max)
    """
    orig_shape = x.shape
    orig_dtype = x.dtype
    B = x.shape[0]
    F = 1
    for d in x.shape[1:]:
        F *= d
    x2d = x.reshape(B, F)

    # ---- Lane-dense (B, R, 128) view; copy-free when F % 128 == 0 ----------
    if F % LANES != 0:
        # TODO(synk): ragged feature tail -> one padded copy (rare path); the
        # common conv-activation case (F % 128 == 0) is fully copy-free.
        pad_cols = LANES - F % LANES
        x2d = jnp.concatenate(
            [x2d, jnp.broadcast_to(x2d[:, :1], (B, pad_cols))], axis=1)
        f_pad = F + pad_cols
    else:
        f_pad = F
    R = f_pad // LANES
    x3d = x2d.reshape(B, R, LANES)

    # ---- Tile sizing (f32-equivalent bytes, bounded independently of B) ----
    target_elems = max(SUBLANES * LANES, target_block_bytes // 4)
    if B * SUBLANES * LANES <= target_elems or B <= SUBLANES:
        tb = B
        tr_budget = max(1, target_elems // (B * LANES))
    else:
        tr_budget = SUBLANES
        tb = max(SUBLANES,
                 ((target_elems // (SUBLANES * LANES)) // SUBLANES) * SUBLANES)
        tb = min(tb, (B // SUBLANES) * SUBLANES)
    if tr_budget >= R:
        tr = R
    else:
        tr = max(SUBLANES, (tr_budget // SUBLANES) * SUBLANES)
    nb = pl.cdiv(B, tb)
    nt = pl.cdiv(R, tr)
    need_row_mask = (R % tr) != 0

    # Split the reduction axis in two "parallel" halves when it tiles evenly,
    # so v7x can shard pass 1 across both TensorCores (no-op on v5e/v6e).
    nsplit = 2 if (nt % 2 == 0 and nt >= 2) else 1
    nk = nt // nsplit

    itemsize = x.dtype.itemsize
    n_elems = B * R * LANES

    # ---------------- Pass 1: per-sample min/max partial reduction ----------
    min_part, max_part = pl.pallas_call(
        functools.partial(_minmax_partial_kernel,
                          nk=nk, tr=tr, rows=R, need_mask=need_row_mask),
        out_shape=(
            jax.ShapeDtypeStruct((nsplit, B, LANES), jnp.float32),
            jax.ShapeDtypeStruct((nsplit, B, LANES), jnp.float32),
        ),
        grid=(nb, nsplit, nk),
        in_specs=[pl.BlockSpec((tb, tr, LANES),
                               lambda b, s, k: (b, s * nk + k, 0))],
        out_specs=(
            pl.BlockSpec((1, tb, LANES), lambda b, s, k: (s, b, 0)),
            pl.BlockSpec((1, tb, LANES), lambda b, s, k: (s, b, 0)),
        ),
        compiler_params=pltpu.CompilerParams(
            dimension_semantics=("parallel", "parallel", "arbitrary"),
            vmem_limit_bytes=vmem_limit_bytes),
        cost_estimate=pl.CostEstimate(
            flops=2 * n_elems, transcendentals=0,
            bytes_accessed=n_elems * itemsize + 2 * nsplit * B * LANES * 4),
    )(x3d)

    # Scalar glue (tiny): finish reductions, batch mean, scale + reciprocal.
    min_v = jnp.mean(jnp.min(min_part, axis=(0, 2)))
    max_v = jnp.mean(jnp.max(max_part, axis=(0, 2)))
    qmax = 2.0 ** num_bits - 1.0
    scale = jnp.maximum((max_v - min_v) / qmax, 1e-8)
    inv_scale = 1.0 / scale
    scalars = jnp.stack([min_v, scale, inv_scale]).astype(jnp.float32)

    # ---------------- Pass 2: streaming elementwise quantize ----------------
    out3d = pl.pallas_call(
        functools.partial(_quantize_kernel, qmax=qmax),
        out_shape=jax.ShapeDtypeStruct((B, R, LANES), orig_dtype),
        grid=(nb, nt),
        in_specs=[
            pl.BlockSpec(memory_space=pltpu.MemorySpace.SMEM),       # scalars
            pl.BlockSpec((tb, tr, LANES), lambda b, t: (b, t, 0)),   # x tile
        ],
        out_specs=pl.BlockSpec((tb, tr, LANES), lambda b, t: (b, t, 0)),
        compiler_params=pltpu.CompilerParams(
            dimension_semantics=("parallel", "parallel"),            # v7x 2 TCs
            vmem_limit_bytes=vmem_limit_bytes),
        cost_estimate=pl.CostEstimate(
            flops=6 * n_elems, transcendentals=0,
            bytes_accessed=2 * n_elems * itemsize + 12),
    )(scalars, x3d)

    out2d = out3d.reshape(B, f_pad)
    if f_pad != F:
        out2d = out2d[:, :F]
    out = out2d.reshape(orig_shape)

    # Running-buffer update (scalar glue, plain JAX).
    new_running_min = running_min * momentum + min_v * (1.0 - momentum)
    new_running_max = running_max * momentum + max_v * (1.0 - momentum)
    # TODO(synk): eval-mode branch (use running buffers as min/max) and the
    # stochastic / enforce_true_zero paths of UniformQuantize are not exercised
    # by QuantMeasure's training forward and are not implemented here.
    return out, new_running_min, new_running_max


def _reference(x_nchw, num_bits=8):
    B = x_nchw.shape[0]
    y = x_nchw.reshape(B, -1).astype(jnp.float32)
    min_v = jnp.mean(jnp.min(y, axis=-1))
    max_v = jnp.mean(jnp.max(y, axis=-1))
    qmin, qmax = 0.0, 2.0 ** num_bits - 1.0
    scale = jnp.maximum((max_v - min_v) / (qmax - qmin), 1e-8)
    q = jnp.round(jnp.clip((y - min_v) / scale, qmin, qmax))
    return (q * scale + min_v).reshape(x_nchw.shape), min_v, max_v


if __name__ == "__main__":
    key = jax.random.PRNGKey(0)
    # Small NCHW input consistent with a conv activation.
    x = jax.random.normal(key, (2, 4, 16, 16), dtype=jnp.float32)

    # Deterministic buffer init, matching register_buffer(torch.zeros(1)).
    running_min = jnp.zeros((1,), dtype=jnp.float32)
    running_max = jnp.zeros((1,), dtype=jnp.float32)
    momentum = 0.1

    fwd = jax.jit(functools.partial(quant_measure_forward,
                                    num_bits=8, momentum=momentum))
    out, new_rmin, new_rmax = fwd(x, running_min, running_max)
    out = jax.block_until_ready(out)
    jax.block_until_ready((new_rmin, new_rmax))

    ref_out, ref_min, ref_max = _reference(x, num_bits=8)
    ref_rmin = running_min * momentum + ref_min * (1.0 - momentum)
    ref_rmax = running_max * momentum + ref_max * (1.0 - momentum)

    assert out.shape == x.shape and out.dtype == x.dtype
    assert jnp.allclose(out, ref_out, atol=1e-5, rtol=1e-5)
    assert jnp.allclose(new_rmin, ref_rmin, atol=1e-6, rtol=1e-6)
    assert jnp.allclose(new_rmax, ref_rmax, atol=1e-6, rtol=1e-6)

    print("KERNEL_OK")
</pallas_src>

<mosaic_0001>
module attributes {stable_mosaic.version = 11 : i64} {
  func.func @_minmax_partial_kernel(%arg0: i32, %arg1: i32, %arg2: i32, %arg3: memref<2x8x128xf32, #tpu.memory_space<vmem>>, %arg4: memref<1x2x128xf32, #tpu.memory_space<vmem>>, %arg5: memref<1x2x128xf32, #tpu.memory_space<vmem>>) attributes {dimension_semantics = [#tpu.dimension_semantics<parallel>, #tpu.dimension_semantics<parallel>, #tpu.dimension_semantics<arbitrary>], iteration_bounds = array<i64: 1, 1, 1>, scalar_prefetch = 0 : i64, scratch_operands = 0 : i64, tpu.core_type = #tpu.core_type<tc>, window_params = [{transform_indices = @transform_0, window_bounds = array<i64: 2, 8, 128>}, {transform_indices = @transform_1, window_bounds = array<i64: 1, 2, 128>}, {transform_indices = @transform_2, window_bounds = array<i64: 1, 2, 128>}]} {
    %c0_i32 = arith.constant 0 : i32
    %0 = arith.cmpi eq, %arg2, %c0_i32 : i32
    %1 = arith.extui %0 : i1 to i32
    %c0_i32_0 = arith.constant 0 : i32
    %2 = arith.cmpi ne, %1, %c0_i32_0 : i32
    scf.if %2 {
      %cst_16 = arith.constant 0x7F800000 : f32
      %14 = vector.broadcast %cst_16 : f32 to vector<1x2x128xf32>
      %c0_17 = arith.constant 0 : index
      %c0_18 = arith.constant 0 : index
      %c0_19 = arith.constant 0 : index
      %15 = vector.load %arg4[%c0_17, %c0_18, %c0_19] : memref<1x2x128xf32, #tpu.memory_space<vmem>>, vector<1x2x128xf32>
      tpu.vector_store %arg4[%c0_17, %c0_18, %c0_19], %14 {strides = array<i32>} : memref<1x2x128xf32, #tpu.memory_space<vmem>>, vector<1x2x128xf32>,
      %cst_20 = arith.constant 0xFF800000 : f32
      %16 = vector.broadcast %cst_20 : f32 to vector<1x2x128xf32>
      %c0_21 = arith.constant 0 : index
      %c0_22 = arith.constant 0 : index
      %c0_23 = arith.constant 0 : index
      %17 = vector.load %arg5[%c0_21, %c0_22, %c0_23] : memref<1x2x128xf32, #tpu.memory_space<vmem>>, vector<1x2x128xf32>
      tpu.vector_store %arg5[%c0_21, %c0_22, %c0_23], %16 {strides = array<i32>} : memref<1x2x128xf32, #tpu.memory_space<vmem>>, vector<1x2x128xf32>,
    } else {
    }
    %c0 = arith.constant 0 : index
    %c0_1 = arith.constant 0 : index
    %c0_2 = arith.constant 0 : index
    %3 = vector.load %arg3[%c0, %c0_1, %c0_2] : memref<2x8x128xf32, #tpu.memory_space<vmem>>, vector<2x8x128xf32>
    %c0_3 = arith.constant 0 : index
    %c0_4 = arith.constant 0 : index
    %c0_5 = arith.constant 0 : index
    %4 = vector.load %arg4[%c0_3, %c0_4, %c0_5] : memref<1x2x128xf32, #tpu.memory_space<vmem>>, vector<1x2x128xf32>
    %cst = arith.constant dense<0x7F800000> : vector<2x128xf32>
    %5 = vector.multi_reduction <minimumf>, %3, %cst [1] : vector<2x8x128xf32> to vector<2x128xf32>
    %6 = vector.shape_cast %5 : vector<2x128xf32> to vector<1x2x128xf32>
    %7 = arith.minimumf %4, %6 : vector<1x2x128xf32>
    %c0_6 = arith.constant 0 : index
    %c0_7 = arith.constant 0 : index
    %c0_8 = arith.constant 0 : index
    %8 = vector.load %arg4[%c0_6, %c0_7, %c0_8] : memref<1x2x128xf32, #tpu.memory_space<vmem>>, vector<1x2x128xf32>
    tpu.vector_store %arg4[%c0_6, %c0_7, %c0_8], %7 {strides = array<i32>} : memref<1x2x128xf32, #tpu.memory_space<vmem>>, vector<1x2x128xf32>,
    %c0_9 = arith.constant 0 : index
    %c0_10 = arith.constant 0 : index
    %c0_11 = arith.constant 0 : index
    %9 = vector.load %arg5[%c0_9, %c0_10, %c0_11] : memref<1x2x128xf32, #tpu.memory_space<vmem>>, vector<1x2x128xf32>
    %cst_12 = arith.constant dense<0xFF800000> : vector<2x128xf32>
    %10 = vector.multi_reduction <maximumf>, %3, %cst_12 [1] : vector<2x8x128xf32> to vector<2x128xf32>
    %11 = vector.shape_cast %10 : vector<2x128xf32> to vector<1x2x128xf32>
    %12 = arith.maximumf %9, %11 : vector<1x2x128xf32>
    %c0_13 = arith.constant 0 : index
    %c0_14 = arith.constant 0 : index
    %c0_15 = arith.constant 0 : index
    %13 = vector.load %arg5[%c0_13, %c0_14, %c0_15] : memref<1x2x128xf32, #tpu.memory_space<vmem>>, vector<1x2x128xf32>
    tpu.vector_store %arg5[%c0_13, %c0_14, %c0_15], %12 {strides = array<i32>} : memref<1x2x128xf32, #tpu.memory_space<vmem>>, vector<1x2x128xf32>,
    return
  }
  func.func @transform_0(%arg0: i32, %arg1: i32, %arg2: i32) -> (i32, i32, i32) {
    %c1_i32 = arith.constant 1 : i32
    %0 = arith.muli %arg1, %c1_i32 : i32
    %1 = arith.addi %0, %arg2 : i32
    %c0_i32 = arith.constant 0 : i32
    %c0_i32_0 = arith.constant 0 : i32
    return %arg0, %1, %c0_i32 : i32, i32, i32
  }
  func.func @transform_1(%arg0: i32, %arg1: i32, %arg2: i32) -> (i32, i32, i32) {
    %c0_i32 = arith.constant 0 : i32
    %c0_i32_0 = arith.constant 0 : i32
    return %arg1, %arg0, %c0_i32 : i32, i32, i32
  }
  func.func @transform_2(%arg0: i32, %arg1: i32, %arg2: i32) -> (i32, i32, i32) {
    %c0_i32 = arith.constant 0 : i32
    %c0_i32_0 = arith.constant 0 : i32
    return %arg1, %arg0, %c0_i32 : i32, i32, i32
  }
}

module attributes {stable_mosaic.version = 11 : i64} {
  func.func @_quantize_kernel(%arg0: i32, %arg1: i32, %arg2: memref<3xf32, #tpu.memory_space<smem>>, %arg3: memref<2x8x128xf32, #tpu.memory_space<vmem>>, %arg4: memref<2x8x128xf32, #tpu.memory_space<vmem>>) attributes {dimension_semantics = [#tpu.dimension_semantics<parallel>, #tpu.dimension_semantics<parallel>], iteration_bounds = array<i64: 1, 1>, scalar_prefetch = 0 : i64, scratch_operands = 0 : i64, tpu.core_type = #tpu.core_type<tc>, window_params = [{transform_indices = @transform_0, window_bounds = array<i64: 3>}, {transform_indices = @transform_1, window_bounds = array<i64: 2, 8, 128>}, {transform_indices = @transform_2, window_bounds = array<i64: 2, 8, 128>}]} {
    %c0 = arith.constant 0 : index
    %0 = memref.load %arg2[%c0] : memref<3xf32, #tpu.memory_space<smem>>
    %c1 = arith.constant 1 : index
    %1 = memref.load %arg2[%c1] : memref<3xf32, #tpu.memory_space<smem>>
    %c2 = arith.constant 2 : index
    %2 = memref.load %arg2[%c2] : memref<3xf32, #tpu.memory_space<smem>>
    %c0_0 = arith.constant 0 : index
    %c0_1 = arith.constant 0 : index
    %c0_2 = arith.constant 0 : index
    %3 = vector.load %arg3[%c0_0, %c0_1, %c0_2] : memref<2x8x128xf32, #tpu.memory_space<vmem>>, vector<2x8x128xf32>
    %4 = vector.broadcast %0 : f32 to vector<2x8x128xf32>
    %5 = arith.subf %3, %4 : vector<2x8x128xf32>
    %6 = vector.broadcast %2 : f32 to vector<2x8x128xf32>
    %7 = arith.mulf %5, %6 : vector<2x8x128xf32>
    %cst = arith.constant 0.000000e+00 : f32
    %cst_3 = arith.constant 2.550000e+02 : f32
    %8 = vector.broadcast %cst : f32 to vector<2x8x128xf32>
    %9 = arith.maximumf %8, %7 : vector<2x8x128xf32>
    %10 = vector.broadcast %cst_3 : f32 to vector<2x8x128xf32>
    %11 = arith.minimumf %10, %9 : vector<2x8x128xf32>
    %12 = math.roundeven %11 : vector<2x8x128xf32>
    %13 = vector.broadcast %1 : f32 to vector<2x8x128xf32>
    %14 = arith.mulf %12, %13 : vector<2x8x128xf32>
    %15 = vector.broadcast %0 : f32 to vector<2x8x128xf32>
    %16 = arith.addf %14, %15 : vector<2x8x128xf32>
    %c0_4 = arith.constant 0 : index
    %c0_5 = arith.constant 0 : index
    %c0_6 = arith.constant 0 : index
    %17 = vector.load %arg4[%c0_4, %c0_5, %c0_6] : memref<2x8x128xf32, #tpu.memory_space<vmem>>, vector<2x8x128xf32>
    tpu.vector_store %arg4[%c0_4, %c0_5, %c0_6], %16 {strides = array<i32>} : memref<2x8x128xf32, #tpu.memory_space<vmem>>, vector<2x8x128xf32>,
    return
  }
  func.func @transform_0(%arg0: i32, %arg1: i32) -> i32 {
    %c0_i32 = arith.constant 0 : i32
    %c0_i32_0 = arith.constant 0 : i32
    return %c0_i32 : i32
  }
  func.func @transform_1(%arg0: i32, %arg1: i32) -> (i32, i32, i32) {
    %c0_i32 = arith.constant 0 : i32
    %c0_i32_0 = arith.constant 0 : i32
    return %arg0, %arg1, %c0_i32 : i32, i32, i32
  }
  func.func @transform_2(%arg0: i32, %arg1: i32) -> (i32, i32, i32) {
    %c0_i32 = arith.constant 0 : i32
    %c0_i32_0 = arith.constant 0 : i32
    return %arg0, %arg1, %c0_i32 : i32, i32, i32
  }
}

</mosaic_0001>

<llo_original>
// kernel: quant_measure_forward.3
$region0: #{quant_measure_forward.3}
  #allocation0 [shape = 'u32[]', space=smem, size = 0x4, offset = 0x4, fixed_abs, tag = 'smem constant byte address 0x4 - core index']
  #allocation1 [shape = 'u32[144,128]{1,0:T(1,128)}', space=vmem, size = 0x12000, scoped, tag = 'internal scratch']
  %s0 = inlined_call_operand.vmem [shape: f32[3], index: 0, kind: input, shape index: {}]
  %s1 = inlined_call_operand.vmem [shape: f32[2,8,128], index: 1, kind: input, shape index: {}]
  %s2 = inlined_call_operand.vmem [shape: f32[2,8,128], index: 2, kind: output, shape index: {}]
  %s3 = sld [smem:[#allocation0]]
  $region22: #{quant_measure_forward.3} parent=0
    _
  %s5 = ssub.s32 1, %s3
  %s6 = scalar_select 0, %s5, %s3
  $region1: #{quant_measure_forward.3} parent=0
    #allocation2 [shape = 'u8[512]{0}', space=smem, size = 0x200, scoped, tag = 'input window, operand 0, single buffered']
    #allocation3 [shape = 's32[1]{0}', space=sflag, size = 0x4, scoped, tag = 'scoped memory for quant_measure_forward.3']
    %7 = vsyncpa [#allocation3], 0
    // Predicated region
    $region2: #{quant_measure_forward.3} parent=1 // pred_check
      _
    $region3: #{quant_measure_forward.3} parent=1 // pred_check_branch
      %9 = sbr.rel (0) target = $region5
    $region4: #{quant_measure_forward.3} parent=1 // pred_region
      %s11 = ssub.s32 16, 16
      %12 = vsyncadd [#allocation3], %s11
      %s14 = sshll.u32 %s0, 4
      %s15 = int_to_ptr.vmem [resolvable:$true] %s14
      %17 = dma.vmem_to_smem %s15, 16, [#allocation2], [#allocation3]
    $region5: #{quant_measure_forward.3} parent=1 // pred_fallthru
      _
    // Predicated region
    $region6: #{quant_measure_forward.3} parent=1 // pred_check
      _
    $region7: #{quant_measure_forward.3} parent=1 // pred_check_branch
      %19 = sbr.rel (0) target = $region9
    $region8: #{quant_measure_forward.3} parent=1 // pred_region
      _
    $region9: #{quant_measure_forward.3} parent=1 // pred_fallthru
      _
    // Predicated region
    $region10: #{quant_measure_forward.3} parent=1 // pred_check
      _
    $region11: #{quant_measure_forward.3} parent=1 // pred_check_branch
      %21 = sbr.rel (0) target = $region13
    $region12: #{quant_measure_forward.3} parent=1 // pred_region
      %22 = dma.done [#allocation3], 16
    $region13: #{quant_measure_forward.3} parent=1 // pred_fallthru
      _
    %23 = sfence
    %s24 = sld [smem:[#allocation2]]
    %s25 = sld [smem:[#allocation2 + $0x1]]
    %s26 = sld [smem:[#allocation2 + $0x2]]
    %v27 = vld [vmem:[%s1] sm:$0xff]
    %v28 = vld [vmem:[%s1 + $0x8] sm:$0xff]
    %v29 = vstv %s24
    %v30 = vsub.f32 %v27, %v29
    %v31 = vsub.f32 %v28, %v29
    %v32 = vstv %s26
    %v33 = vmul.f32 %v30, %v32
    %v34 = vmul.f32 %v31, %v32
    %v35 = vmax.f32 %v33, 0.0
    %v36 = vmax.f32 %v34, 0.0
    %v37 = vmin.f32 %v35, 255.0
    %v38 = vmin.f32 %v36, 255.0
    %v39 = vround.ne.pseudo %v37
    %v40 = vround.ne.pseudo %v38
    %v41 = vstv %s25
    %v42 = vmul.f32 %v39, %v41
    %v43 = vmul.f32 %v40, %v41
    %v44 = vadd.f32 %v42, %v29
    %v45 = vadd.f32 %v43, %v29
    %46 = vst [vmem:[%s2] sm:$0xff] %v44
    %47 = vst [vmem:[%s2 + $0x8] sm:$0xff] %v45
    // Predicated region
    $region14: #{quant_measure_forward.3} parent=1 // pred_check
      _
    $region15: #{quant_measure_forward.3} parent=1 // pred_check_branch
      %49 = sbr.rel (0) target = $region17
    $region16: #{quant_measure_forward.3} parent=1 // pred_region
      _
    $region17: #{quant_measure_forward.3} parent=1 // pred_fallthru
      _
    // Predicated region
    $region18: #{quant_measure_forward.3} parent=1 // pred_check
      _
    $region19: #{quant_measure_forward.3} parent=1 // pred_check_branch
      %51 = sbr.rel (0) target = $region21
    $region20: #{quant_measure_forward.3} parent=1 // pred_region
      _
    $region21: #{quant_measure_forward.3} parent=1 // pred_fallthru
      _
    %52 = vsyncpa [#allocation3], 1

// kernel: quant_measure_forward.2
$region0: #{quant_measure_forward.2}
  #allocation0 [shape = 'u32[]', space=smem, size = 0x4, offset = 0x4, fixed_abs, tag = 'smem constant byte address 0x4 - core index']
  #allocation1 [shape = 'u32[144,128]{1,0:T(1,128)}', space=vmem, size = 0x12000, scoped, tag = 'internal scratch']
  %s0 = inlined_call_operand.vmem [shape: f32[2,8,128], index: 0, kind: input, shape index: {}]
  %s1 = inlined_call_operand.vmem [shape: f32[1,2,128], index: 1, kind: output, shape index: {0}]
  %s2 = inlined_call_operand.vmem [shape: f32[1,2,128], index: 2, kind: output, shape index: {1}]
  %3 = xla_tuple %s1, %s2
  %s4 = sld [smem:[#allocation0]]
  $region26: #{quant_measure_forward.2} parent=0
    _
  %s6 = ssub.s32 1, %s4
  %s7 = scalar_select 0, %s6, %s4
  // Predicated region
  $region2: #{quant_measure_forward.2} parent=0 // pred_check
    _
  $region3: #{quant_measure_forward.2} parent=0 // pred_check_branch
    %9 = sbr.rel (0) target = $region5
  $region4: #{quant_measure_forward.2} parent=0 // pred_region
    %s10 = sadd.s32 0, 0
    %p11 = scmp.lt.s32.totalorder %s10, 0
    %s12 = scalar_select %p11, %s10, 0
    %s13 = smul.addr %s12, 8
    %s14 = scalar_lea.vmem %s0, %s13
    %s15 = sadd.s32 0, 0
  $region5: #{quant_measure_forward.2} parent=0 // pred_fallthru
    _
  %s16 = sadd.s32 0, 0
  %p17 = scmp.lt.s32.totalorder %s16, 0
  %s18 = scalar_select %p17, %s16, 0
  %s19 = smul.addr %s18, 8
  %s20 = scalar_lea.vmem %s0, %s19
  %s21 = sadd.s32 0, 0
  %p22 = scmp.lt.s32.totalorder %s21, 0
  %s23 = scalar_select %p22, %s21, 0
  %s24 = smul.addr %s23, 8
  %s25 = scalar_lea.vmem %s0, %s24
  %s26 = sadd.s32 0, 0
  %p27 = scmp.eq.s32.totalorder 0, 0
  // Predicated region
  $region6: #{quant_measure_forward.2} parent=0 // pred_check
    %p28 = pneg %p27
  $region7: #{quant_measure_forward.2} parent=0 // pred_check_branch
    %30 = sbr.rel (%p28) target = $region9
  $region8: #{quant_measure_forward.2} parent=0 // pred_region
    %31 = vst [vmem:[%s1] sm:$0x3] inf
    %32 = vst [vmem:[%s2] sm:$0x3] -inf
  $region9: #{quant_measure_forward.2} parent=0 // pred_fallthru
    _
  %v33 = vld [vmem:[%s25] sm:$0xff]
  %v34 = vld [vmem:[%s25 + $0x8] sm:$0xff]
  %v35 = vld [vmem:[%s1] sm:$0x3]
  %v36 = vrot.slane %v33, 4
  %v37 = vmin.f32 %v33, %v36
  %v38 = vrot.slane %v37, 2
  %v39 = vmin.f32 %v37, %v38
  %v40 = vrot.slane %v39, 1
  %v41 = vmin.f32 %v39, %v40
  %v42 = vrot.slane %v34, 4
  %v43 = vmin.f32 %v34, %v42
  %v44 = vrot.slane %v43, 2
  %v45 = vmin.f32 %v43, %v44
  %v46 = vrot.slane %v45, 1
  %v47 = vmin.f32 %v45, %v46
  %vm50 = vcmask 1041409
  %v51 = vsel %vm50, %v47, %v41
  %v53 = vmin.f32 %v35, %v51
  %54 = vst [vmem:[%s1] sm:$0x3] %v53
  %v55 = vld [vmem:[%s2] sm:$0x3]
  %v56 = vrot.slane %v33, 4
  %v57 = vmax.f32 %v33, %v56
  %v58 = vrot.slane %v57, 2
  %v59 = vmax.f32 %v57, %v58
  %v60 = vrot.slane %v59, 1
  %v61 = vmax.f32 %v59, %v60
  %v62 = vrot.slane %v34, 4
  %v63 = vmax.f32 %v34, %v62
  %v64 = vrot.slane %v63, 2
  %v65 = vmax.f32 %v63, %v64
  %v66 = vrot.slane %v65, 1
  %v67 = vmax.f32 %v65, %v66
  %v70 = vsel %vm50, %v67, %v61
  %v72 = vmax.f32 %v55, %v70
  %73 = vst [vmem:[%s2] sm:$0x3] %v72
  // Predicated region
  $region10: #{quant_measure_forward.2} parent=0 // pred_check
    _
  $region11: #{quant_measure_forward.2} parent=0 // pred_check_branch
    %75 = sbr.rel (0) target = $region13
  $region12: #{quant_measure_forward.2} parent=0 // pred_region
    _
  $region13: #{quant_measure_forward.2} parent=0 // pred_fallthru
    _
  // Predicated region
  $region14: #{quant_measure_forward.2} parent=0 // pred_check
    _
  $region15: #{quant_measure_forward.2} parent=0 // pred_check_branch
    %77 = sbr.rel (0) target = $region17
  $region16: #{quant_measure_forward.2} parent=0 // pred_region
    _
  $region17: #{quant_measure_forward.2} parent=0 // pred_fallthru
    _
  // Predicated region
  $region18: #{quant_measure_forward.2} parent=0 // pred_check
    _
  $region19: #{quant_measure_forward.2} parent=0 // pred_check_branch
    %79 = sbr.rel (0) target = $region21
  $region20: #{quant_measure_forward.2} parent=0 // pred_region
    _
  $region21: #{quant_measure_forward.2} parent=0 // pred_fallthru
    _
  // Predicated region
  $region22: #{quant_measure_forward.2} parent=0 // pred_check
    _
  $region23: #{quant_measure_forward.2} parent=0 // pred_check_branch
    %81 = sbr.rel (0) target = $region25
  $region24: #{quant_measure_forward.2} parent=0 // pred_region
    _
  $region25: #{quant_measure_forward.2} parent=0 // pred_fallthru
    _

</llo_original>
